<compile_context>
chip_gen: v7x
topology: tpu7x:2x2x1
jax: 0.10.0
libtpu: 0.0.40
codegen_flags: <defaults>
</compile_context>

<pallas_src>
import jax
import jax.numpy as jnp
from jax import lax
from jax.experimental import pallas as pl
from jax.experimental.pallas import tpu as pltpu


def affine_kernel(x_ref, w1_ref, w2_ref, o_ref):
    # h1 = relu(x @ W1^T)
    # Weights are in PyTorch layout (H, Din): contract x dim 1 with w1 dim 1
    # (trans-B matmul); the MXU handles this directly, no transpose pass.
    h1 = jnp.maximum(
        lax.dot_general(
            x_ref[...], w1_ref[...],
            dimension_numbers=(((1,), (1,)), ((), ())),
            preferred_element_type=jnp.float32,
        ),
        0.0,
    )

    w2 = w2_ref[...]  # (Dout, H), PyTorch layout
    if w2.shape[0] == 1:
        # Dout == 1: an MXU matmul would pad N to 128 and K(=20) to 128 for
        # nothing. Do a broadcast multiply + lane reduce on the VPU/XLU.
        m = jnp.sum(h1 * w2, axis=-1, keepdims=True)  # (B, H)*(1, H) -> (B, 1)
    else:
        # General Dout: trans-B matmul on the MXU.
        m = lax.dot_general(
            h1, w2,
            dimension_numbers=(((1,), (1,)), ((), ())),
            preferred_element_type=jnp.float32,
        )
    o_ref[...] = m.astype(o_ref.dtype)


def affine_model(x, w1, w2, *, batch_tile=1024):
    """x: (B, Din)  w1: (H, Din)  w2: (Dout, H)  ->  (B, Dout)

    Weights keep PyTorch nn.Linear layout (out_features, in_features); no
    per-call transpose is performed.
    """
    B, Din = x.shape
    H = w1.shape[0]
    Dout = w2.shape[0]
    out_shape = jax.ShapeDtypeStruct((B, Dout), x.dtype)

    if B <= batch_tile or B % batch_tile != 0:
        # Small batch: gridless launch, whole problem resident in VMEM.
        # Block shape == full array shape, so the (8,128) rule is satisfied.
        return pl.pallas_call(
            affine_kernel,
            out_shape=out_shape,
            in_specs=[
                pl.BlockSpec(memory_space=pltpu.MemorySpace.VMEM),
                pl.BlockSpec(memory_space=pltpu.MemorySpace.VMEM),
                pl.BlockSpec(memory_space=pltpu.MemorySpace.VMEM),
            ],
            out_specs=pl.BlockSpec(memory_space=pltpu.MemorySpace.VMEM),
        )(x, w1, w2)

    # Large batch: tile the batch axis; weights are the same block every step.
    # "parallel" lets Mosaic shard batch tiles across both TCs on v7x and keeps
    # per-block VMEM bounded on v5e (16 MiB default scoped limit).
    grid = (B // batch_tile,)
    return pl.pallas_call(
        affine_kernel,
        out_shape=out_shape,
        grid=grid,
        in_specs=[
            pl.BlockSpec((batch_tile, Din), lambda i: (i, 0)),
            pl.BlockSpec((H, Din), lambda i: (0, 0)),
            pl.BlockSpec((Dout, H), lambda i: (0, 0)),
        ],
        out_specs=pl.BlockSpec((batch_tile, Dout), lambda i: (i, 0)),
        compiler_params=pltpu.CompilerParams(
            dimension_semantics=("parallel",),
        ),
    )(x, w1, w2)


def affine_model_ref(x, w1, w2):
    h1 = jnp.maximum(x @ w1.T, 0.0)
    return h1 @ w2.T


if __name__ == "__main__":
    # Module defaults: input_features=768, hidden_features=20, output_features=1
    batch = 8
    input_features = 768
    hidden_features = 20
    output_features = 1

    key = jax.random.PRNGKey(0)
    kx, k1, k2 = jax.random.split(key, 3)

    x = jax.random.normal(kx, (batch, input_features), dtype=jnp.float32)
    # Deterministic synthetic init (Kaiming-uniform-ish scale, exact dist irrelevant)
    w1 = jax.random.uniform(
        k1, (hidden_features, input_features), dtype=jnp.float32,
        minval=-1.0, maxval=1.0) * (1.0 / jnp.sqrt(input_features))
    w2 = jax.random.uniform(
        k2, (output_features, hidden_features), dtype=jnp.float32,
        minval=-1.0, maxval=1.0) * (1.0 / jnp.sqrt(hidden_features))

    out = affine_model(x, w1, w2)
    out = jax.block_until_ready(out)

    ref = affine_model_ref(x, w1, w2)
    assert out.shape == (batch, output_features), out.shape
    assert jnp.allclose(out, ref, atol=1e-5, rtol=1e-5), (
        float(jnp.max(jnp.abs(out - ref))))

    print("KERNEL_OK")
</pallas_src>

<mosaic_0001>
module attributes {stable_mosaic.version = 11 : i64} {
  func.func @affine_kernel(%arg0: memref<8x768xf32, #tpu.memory_space<vmem>>, %arg1: memref<20x768xf32, #tpu.memory_space<vmem>>, %arg2: memref<1x20xf32, #tpu.memory_space<vmem>>, %arg3: memref<8x1xf32, #tpu.memory_space<vmem>>) attributes {dimension_semantics = [], scalar_prefetch = 0 : i64, scratch_operands = 0 : i64, tpu.core_type = #tpu.core_type<tc>} {
    %c0 = arith.constant 0 : index
    %c0_0 = arith.constant 0 : index
    %0 = vector.load %arg0[%c0, %c0_0] : memref<8x768xf32, #tpu.memory_space<vmem>>, vector<8x768xf32>
    %c0_1 = arith.constant 0 : index
    %c0_2 = arith.constant 0 : index
    %1 = vector.load %arg1[%c0_1, %c0_2] : memref<20x768xf32, #tpu.memory_space<vmem>>, vector<20x768xf32>
    %cst = arith.constant dense<0.000000e+00> : vector<8x20xf32>
    %2 = tpu.matmul %0, %1, %cst {dimension_numbers = #tpu.dot_dimension_numbers<[1], [1], [0], [0], [0, 0, 1, 0], [], []>} : vector<8x768xf32>, vector<20x768xf32>, vector<8x20xf32> -> vector<8x20xf32>
    %cst_3 = arith.constant 0.000000e+00 : f32
    %3 = vector.broadcast %cst_3 : f32 to vector<8x20xf32>
    %4 = arith.maximumf %2, %3 : vector<8x20xf32>
    %c0_4 = arith.constant 0 : index
    %c0_5 = arith.constant 0 : index
    %5 = vector.load %arg2[%c0_4, %c0_5] : memref<1x20xf32, #tpu.memory_space<vmem>>, vector<1x20xf32>
    %6 = vector.broadcast %5 : vector<1x20xf32> to vector<8x20xf32>
    %7 = arith.mulf %4, %6 : vector<8x20xf32>
    %cst_6 = arith.constant dense<0.000000e+00> : vector<8xf32>
    %8 = vector.multi_reduction <add>, %7, %cst_6 [1] : vector<8x20xf32> to vector<8xf32>
    %9 = vector.shape_cast %8 : vector<8xf32> to vector<8x1xf32>
    %c0_7 = arith.constant 0 : index
    %c0_8 = arith.constant 0 : index
    %10 = vector.load %arg3[%c0_7, %c0_8] : memref<8x1xf32, #tpu.memory_space<vmem>>, vector<8x1xf32>
    tpu.vector_store %arg3[%c0_7, %c0_8], %9 {strides = array<i32>} : memref<8x1xf32, #tpu.memory_space<vmem>>, vector<8x1xf32>,
    return
  }
}

</mosaic_0001>

<llo_original>
// kernel: tpu_custom_call.1
$region0: #{tpu_custom_call.1}
  #allocation0 [shape = 'u32[]', space=smem, size = 0x4, offset = 0x4, fixed_abs, tag = 'smem constant byte address 0x4 - core index']
  #allocation1 [shape = 'u32[144,128]{1,0:T(1,128)}', space=vmem, size = 0x12000, scoped, tag = 'internal scratch']
  %s0 = inlined_call_operand.hbm [shape: f32[8,768], index: 0, kind: input, shape index: {}]
  %s1 = inlined_call_operand.hbm [shape: f32[20,768], index: 1, kind: input, shape index: {}]
  %s2 = inlined_call_operand.vmem [shape: f32[1,20], index: 2, kind: input, shape index: {}]
  %s3 = inlined_call_operand.vmem [shape: f32[8,1], index: 3, kind: output, shape index: {}]
  %s4 = sld [smem:[#allocation0]]
  $region30: #{tpu_custom_call.1} parent=0
    _
  %s6 = ssub.s32 1, %s4
  %s7 = scalar_select 0, %s6, %s4
  $region1: #{tpu_custom_call.1} parent=0
    #allocation2 [shape = 'u8[24576]{0}', space=vmem, size = 0x6000, scoped, tag = 'input window, operand 0, single buffered']
    #allocation3 [shape = 's32[1]{0}', space=sflag, size = 0x4, scoped, tag = 'scoped memory for tpu_custom_call.1']
    #allocation4 [shape = 'u8[73728]{0}', space=vmem, size = 0x12000, scoped, tag = 'input window, operand 1, single buffered']
    #allocation5 [shape = 's32[1]{0}', space=sflag, size = 0x4, scoped, tag = 'scoped memory for tpu_custom_call.1']
    %8 = vsyncpa [#allocation3], 0
    %9 = vsyncpa [#allocation5], 0
    // Predicated region
    $region2: #{tpu_custom_call.1} parent=1 // pred_check
      _
    $region3: #{tpu_custom_call.1} parent=1 // pred_check_branch
      %11 = sbr.rel (0) target = $region5
    $region4: #{tpu_custom_call.1} parent=1 // pred_region
      %s13 = ssub.s32 768, 768
      %14 = vsyncadd [#allocation3], %s13
      %s16 = sshll.u32 [#allocation2], 4
      %s17 = int_to_ptr.vmem [resolvable:$true] %s16
      %19 = dma.hbm_to_vmem [thread:$0]  %s0, 768, %s17, [#allocation3]
    $region5: #{tpu_custom_call.1} parent=1 // pred_fallthru
      _
    // Predicated region
    $region6: #{tpu_custom_call.1} parent=1 // pred_check
      _
    $region7: #{tpu_custom_call.1} parent=1 // pred_check_branch
      %21 = sbr.rel (0) target = $region9
    $region8: #{tpu_custom_call.1} parent=1 // pred_region
      %s23 = ssub.s32 2304, 2304
      %24 = vsyncadd [#allocation5], %s23
      %s25 = sshll.u32 [#allocation4], 4
      %s26 = int_to_ptr.vmem [resolvable:$true] %s25
      %31 = dma.hbm_to_vmem [thread:$0]  %s1, 2304, %s26, [#allocation5], 768, 768, 48
    $region9: #{tpu_custom_call.1} parent=1 // pred_fallthru
      _
    // Predicated region
    $region10: #{tpu_custom_call.1} parent=1 // pred_check
      _
    $region11: #{tpu_custom_call.1} parent=1 // pred_check_branch
      %33 = sbr.rel (0) target = $region13
    $region12: #{tpu_custom_call.1} parent=1 // pred_region
      _
    $region13: #{tpu_custom_call.1} parent=1 // pred_fallthru
      _
    // Predicated region
    $region14: #{tpu_custom_call.1} parent=1 // pred_check
      _
    $region15: #{tpu_custom_call.1} parent=1 // pred_check_branch
      %35 = sbr.rel (0) target = $region17
    $region16: #{tpu_custom_call.1} parent=1 // pred_region
      %36 = dma.done [#allocation3], 768
    $region17: #{tpu_custom_call.1} parent=1 // pred_fallthru
      _
    // Predicated region
    $region18: #{tpu_custom_call.1} parent=1 // pred_check
      _
    $region19: #{tpu_custom_call.1} parent=1 // pred_check_branch
      %38 = sbr.rel (0) target = $region21
    $region20: #{tpu_custom_call.1} parent=1 // pred_region
      %39 = dma.done [#allocation5], 2304
    $region21: #{tpu_custom_call.1} parent=1 // pred_fallthru
      _
    %v40 = vld [vmem:[#allocation2] sm:$0xff]
    %v41 = vld [vmem:[#allocation2 + $0x8] sm:$0xff]
    %v42 = vld [vmem:[#allocation2 + $0x10] sm:$0xff]
    %v43 = vld [vmem:[#allocation2 + $0x18] sm:$0xff]
    %v44 = vld [vmem:[#allocation2 + $0x20] sm:$0xff]
    %v45 = vld [vmem:[#allocation2 + $0x28] sm:$0xff]
    %v46 = vld [vmem:[#allocation4] sm:$0xff]
    %v47 = vld [vmem:[#allocation4 + $0x8] sm:$0xff]
    %v48 = vld [vmem:[#allocation4 + $0x10] sm:$0xff]
    %v49 = vld [vmem:[#allocation4 + $0x18] sm:$0xff]
    %v50 = vld [vmem:[#allocation4 + $0x20] sm:$0xff]
    %v51 = vld [vmem:[#allocation4 + $0x28] sm:$0xff]
    %v52 = vld [vmem:[#allocation4 + $0x30] sm:$0xff]
    %v53 = vld [vmem:[#allocation4 + $0x38] sm:$0xff]
    %v54 = vld [vmem:[#allocation4 + $0x40] sm:$0xff]
    %v55 = vld [vmem:[#allocation4 + $0x48] sm:$0xff]
    %v56 = vld [vmem:[#allocation4 + $0x50] sm:$0xff]
    %v57 = vld [vmem:[#allocation4 + $0x58] sm:$0xff]
    %v58 = vld [vmem:[#allocation4 + $0x60] sm:$0xf]
    %v59 = vld [vmem:[#allocation4 + $0x68] sm:$0xf]
    %v60 = vld [vmem:[#allocation4 + $0x70] sm:$0xf]
    %v61 = vld [vmem:[#allocation4 + $0x78] sm:$0xf]
    %v62 = vld [vmem:[#allocation4 + $0x80] sm:$0xf]
    %v63 = vld [vmem:[#allocation4 + $0x88] sm:$0xf]
    %64 = vmatprep.subr.mxu0 %v47
    %65 = vmatpush1.xpose.msra.mxu0 %v46
    %66 = vmatprep.subr.mxu0 %v53
    %67 = vmatpush1.xpose.msra.mxu0 %v52
    %68 = vmatprep.subr.mxu0 %v59
    %69 = vmatpush1.xpose.msra.mxu0 %v58
    %70 = vmatprep.subr.mxu0 0.0
    %71 = vmatpush1.xpose.msra.mxu0 0.0
    %72 = vmatprep.subr.mxu0 0.0
    %73 = vmatpush1.xpose.msra.mxu0 0.0
    %74 = vmatprep.subr.mxu0 0.0
    %75 = vmatpush1.xpose.msra.mxu0 0.0
    %76 = vmatprep.subr.mxu0 0.0
    %77 = vmatpush1.xpose.msra.mxu0 0.0
    %78 = vmatprep.subr.mxu0 0.0
    %79 = vmatpush1.xpose.msra.mxu0 0.0
    %80 = vmatprep.subr.mxu0 0.0
    %81 = vmatpush1.xpose.msra.mxu0 0.0
    %82 = vmatprep.subr.mxu0 0.0
    %83 = vmatpush1.xpose.msra.mxu0 0.0
    %84 = vmatprep.subr.mxu0 0.0
    %85 = vmatpush1.xpose.msra.mxu0 0.0
    %86 = vmatprep.subr.mxu0 0.0
    %87 = vmatpush1.xpose.msra.mxu0 0.0
    %88 = vmatprep.subr.mxu0 0.0
    %89 = vmatpush1.xpose.msra.mxu0 0.0
    %90 = vmatprep.subr.mxu0 0.0
    %91 = vmatpush1.xpose.msra.mxu0 0.0
    %92 = vmatprep.subr.mxu0 0.0
    %93 = vmatpush1.xpose.msra.mxu0 0.0
    %94 = vmatprep.subr.mxu0 0.0
    %95 = vmatpush1.xpose.msra.mxu0 0.0
    %96 = vmatprep.subr.mxu0 0.0
    %97 = vmatpush1.xpose.msra.mxu0 0.0
    %98 = vmatprep.subr.mxu0 0.0
    %99 = vmatpush1.xpose.msra.mxu0 0.0
    %100 = vmatprep.subr.mxu0 0.0
    %101 = vmatpush1.xpose.msra.mxu0 0.0
    %102 = vmatprep.subr.mxu0 0.0
    %103 = vmatpush1.xpose.msra.mxu0 0.0
    %104 = vmatprep.subr.mxu0 0.0
    %105 = vmatpush1.xpose.msra.mxu0 0.0
    %106 = vmatprep.subr.mxu0 0.0
    %107 = vmatpush1.xpose.msra.mxu0 0.0
    %108 = vmatprep.subr.mxu0 0.0
    %109 = vmatpush1.xpose.msra.mxu0 0.0
    %110 = vmatprep.subr.mxu0 0.0
    %111 = vmatpush1.xpose.msra.mxu0 0.0
    %112 = vmatprep.subr.mxu0 0.0
    %113 = vmatpush1.xpose.msra.mxu0 0.0
    %114 = vmatprep.subr.mxu0 0.0
    %115 = vmatpush1.xpose.msra.mxu0 0.0
    %116 = vmatprep.subr.mxu0 0.0
    %117 = vmatpush1.xpose.msra.mxu0 0.0
    %118 = vmatprep.subr.mxu0 0.0
    %119 = vmatpush1.xpose.msra.mxu0 0.0
    %120 = vmatprep.subr.mxu0 0.0
    %121 = vmatpush1.xpose.msra.mxu0 0.0
    %122 = vmatprep.subr.mxu0 0.0
    %123 = vmatpush1.xpose.msra.mxu0 0.0
    %124 = vmatprep.subr.mxu0 0.0
    %125 = vmatpush1.xpose.msra.mxu0 0.0
    %126 = vmatprep.subr.mxu0 0.0
    %127 = vmatpush1.xpose.msra.mxu0 0.0
    %128 = vmatprep.mubr.f32.mxu0 %v41
    %129 = vmatmul.mubr.f32.gmra.mrb[0].mxu0 %v40
    %v130 = vpop.f32.mrb[0].mxu0
    %v131 = vadd.f32 0.0, %v130
    %v132 = vpop.f32.mrb[0].mxu0
    %133 = vdwg.mxu0
    %134 = vmatprep.subr.mxu0 %v49
    %135 = vmatpush1.xpose.msra.mxu0 %v48
    %136 = vmatprep.subr.mxu0 %v55
    %137 = vmatpush1.xpose.msra.mxu0 %v54
    %138 = vmatprep.subr.mxu0 %v61
    %139 = vmatpush1.xpose.msra.mxu0 %v60
    %140 = vmatprep.subr.mxu0 0.0
    %141 = vmatpush1.xpose.msra.mxu0 0.0
    %142 = vmatprep.subr.mxu0 0.0
    %143 = vmatpush1.xpose.msra.mxu0 0.0
    %144 = vmatprep.subr.mxu0 0.0
    %145 = vmatpush1.xpose.msra.mxu0 0.0
    %146 = vmatprep.subr.mxu0 0.0
    %147 = vmatpush1.xpose.msra.mxu0 0.0
    %148 = vmatprep.subr.mxu0 0.0
    %149 = vmatpush1.xpose.msra.mxu0 0.0
    %150 = vmatprep.subr.mxu0 0.0
    %151 = vmatpush1.xpose.msra.mxu0 0.0
    %152 = vmatprep.subr.mxu0 0.0
    %153 = vmatpush1.xpose.msra.mxu0 0.0
    %154 = vmatprep.subr.mxu0 0.0
    %155 = vmatpush1.xpose.msra.mxu0 0.0
    %156 = vmatprep.subr.mxu0 0.0
    %157 = vmatpush1.xpose.msra.mxu0 0.0
    %158 = vmatprep.subr.mxu0 0.0
    %159 = vmatpush1.xpose.msra.mxu0 0.0
    %160 = vmatprep.subr.mxu0 0.0
    %161 = vmatpush1.xpose.msra.mxu0 0.0
    %162 = vmatprep.subr.mxu0 0.0
    %163 = vmatpush1.xpose.msra.mxu0 0.0
    %164 = vmatprep.subr.mxu0 0.0
    %165 = vmatpush1.xpose.msra.mxu0 0.0
    %166 = vmatprep.subr.mxu0 0.0
    %167 = vmatpush1.xpose.msra.mxu0 0.0
    %168 = vmatprep.subr.mxu0 0.0
    %169 = vmatpush1.xpose.msra.mxu0 0.0
    %170 = vmatprep.subr.mxu0 0.0
    %171 = vmatpush1.xpose.msra.mxu0 0.0
    %172 = vmatprep.subr.mxu0 0.0
    %173 = vmatpush1.xpose.msra.mxu0 0.0
    %174 = vmatprep.subr.mxu0 0.0
    %175 = vmatpush1.xpose.msra.mxu0 0.0
    %176 = vmatprep.subr.mxu0 0.0
    %177 = vmatpush1.xpose.msra.mxu0 0.0
    %178 = vmatprep.subr.mxu0 0.0
    %179 = vmatpush1.xpose.msra.mxu0 0.0
    %180 = vmatprep.subr.mxu0 0.0
    %181 = vmatpush1.xpose.msra.mxu0 0.0
    %182 = vmatprep.subr.mxu0 0.0
    %183 = vmatpush1.xpose.msra.mxu0 0.0
    %184 = vmatprep.subr.mxu0 0.0
    %185 = vmatpush1.xpose.msra.mxu0 0.0
    %186 = vmatprep.subr.mxu0 0.0
    %187 = vmatpush1.xpose.msra.mxu0 0.0
    %188 = vmatprep.subr.mxu0 0.0
    %189 = vmatpush1.xpose.msra.mxu0 0.0
    %190 = vmatprep.subr.mxu0 0.0
    %191 = vmatpush1.xpose.msra.mxu0 0.0
    %192 = vmatprep.subr.mxu0 0.0
    %193 = vmatpush1.xpose.msra.mxu0 0.0
    %194 = vmatprep.subr.mxu0 0.0
    %195 = vmatpush1.xpose.msra.mxu0 0.0
    %196 = vmatprep.subr.mxu0 0.0
    %197 = vmatpush1.xpose.msra.mxu0 0.0
    %198 = vmatprep.mubr.f32.mxu0 %v43
    %199 = vmatmul.mubr.f32.gmra.mrb[0].mxu0 %v42
    %v200 = vpop.f32.mrb[0].mxu0
    %v201 = vadd.f32 %v131, %v200
    %v202 = vpop.f32.mrb[0].mxu0
    %203 = vdwg.mxu0
    %204 = vmatprep.subr.mxu0 %v51
    %205 = vmatpush1.xpose.msra.mxu0 %v50
    %206 = vmatprep.subr.mxu0 %v57
    %207 = vmatpush1.xpose.msra.mxu0 %v56
    %208 = vmatprep.subr.mxu0 %v63
    %209 = vmatpush1.xpose.msra.mxu0 %v62
    %210 = vmatprep.subr.mxu0 0.0
    %211 = vmatpush1.xpose.msra.mxu0 0.0
    %212 = vmatprep.subr.mxu0 0.0
    %213 = vmatpush1.xpose.msra.mxu0 0.0
    %214 = vmatprep.subr.mxu0 0.0
    %215 = vmatpush1.xpose.msra.mxu0 0.0
    %216 = vmatprep.subr.mxu0 0.0
    %217 = vmatpush1.xpose.msra.mxu0 0.0
    %218 = vmatprep.subr.mxu0 0.0
    %219 = vmatpush1.xpose.msra.mxu0 0.0
    %220 = vmatprep.subr.mxu0 0.0
    %221 = vmatpush1.xpose.msra.mxu0 0.0
    %222 = vmatprep.subr.mxu0 0.0
    %223 = vmatpush1.xpose.msra.mxu0 0.0
    %224 = vmatprep.subr.mxu0 0.0
    %225 = vmatpush1.xpose.msra.mxu0 0.0
    %226 = vmatprep.subr.mxu0 0.0
    %227 = vmatpush1.xpose.msra.mxu0 0.0
    %228 = vmatprep.subr.mxu0 0.0
    %229 = vmatpush1.xpose.msra.mxu0 0.0
    %230 = vmatprep.subr.mxu0 0.0
    %231 = vmatpush1.xpose.msra.mxu0 0.0
    %232 = vmatprep.subr.mxu0 0.0
    %233 = vmatpush1.xpose.msra.mxu0 0.0
    %234 = vmatprep.subr.mxu0 0.0
    %235 = vmatpush1.xpose.msra.mxu0 0.0
    %236 = vmatprep.subr.mxu0 0.0
    %237 = vmatpush1.xpose.msra.mxu0 0.0
    %238 = vmatprep.subr.mxu0 0.0
    %239 = vmatpush1.xpose.msra.mxu0 0.0
    %240 = vmatprep.subr.mxu0 0.0
    %241 = vmatpush1.xpose.msra.mxu0 0.0
    %242 = vmatprep.subr.mxu0 0.0
    %243 = vmatpush1.xpose.msra.mxu0 0.0
    %244 = vmatprep.subr.mxu0 0.0
    %245 = vmatpush1.xpose.msra.mxu0 0.0
    %246 = vmatprep.subr.mxu0 0.0
    %247 = vmatpush1.xpose.msra.mxu0 0.0
    %248 = vmatprep.subr.mxu0 0.0
    %249 = vmatpush1.xpose.msra.mxu0 0.0
    %250 = vmatprep.subr.mxu0 0.0
    %251 = vmatpush1.xpose.msra.mxu0 0.0
    %252 = vmatprep.subr.mxu0 0.0
    %253 = vmatpush1.xpose.msra.mxu0 0.0
    %254 = vmatprep.subr.mxu0 0.0
    %255 = vmatpush1.xpose.msra.mxu0 0.0
    %256 = vmatprep.subr.mxu0 0.0
    %257 = vmatpush1.xpose.msra.mxu0 0.0
    %258 = vmatprep.subr.mxu0 0.0
    %259 = vmatpush1.xpose.msra.mxu0 0.0
    %260 = vmatprep.subr.mxu0 0.0
    %261 = vmatpush1.xpose.msra.mxu0 0.0
    %262 = vmatprep.subr.mxu0 0.0
    %263 = vmatpush1.xpose.msra.mxu0 0.0
    %264 = vmatprep.subr.mxu0 0.0
    %265 = vmatpush1.xpose.msra.mxu0 0.0
    %266 = vmatprep.subr.mxu0 0.0
    %267 = vmatpush1.xpose.msra.mxu0 0.0
    %268 = vmatprep.mubr.f32.mxu0 %v45
    %269 = vmatmul.mubr.f32.gmra.mrb[0].mxu0 %v44
    %v270 = vpop.f32.mrb[0].mxu0
    %v271 = vadd.f32 %v201, %v270
    %v272 = vpop.f32.mrb[0].mxu0
    %273 = vdwg.mxu0
    %v274 = vmax.f32 %v271, 0.0
    %v275 = vld [vmem:[%s2] sm:$0x1]
    %v277 = vlaneseq
    %v278 = vshrl.u32 %v277, 7
    %v279 = vsub.s32 0, %v278
    %v280 = vrot.slane %v275, %v279
    %v282 = vmul.f32 %v274, %v280
    %vm283 = vcmask 162816
    %v284 = vsel %vm283, %v282, 0.0
    %285 = vadd.xlane.f32.xlu0 %v284
    %v286 = vpop.xlane.xlu0 %285
    %vm287 = vcmask 7168
    %288 = vst.msk [vmem:[%s3] sm:$0xff] %vm287, %v286
    // Predicated region
    $region22: #{tpu_custom_call.1} parent=1 // pred_check
      _
    $region23: #{tpu_custom_call.1} parent=1 // pred_check_branch
      %290 = sbr.rel (0) target = $region25
    $region24: #{tpu_custom_call.1} parent=1 // pred_region
      _
    $region25: #{tpu_custom_call.1} parent=1 // pred_fallthru
      _
    // Predicated region
    $region26: #{tpu_custom_call.1} parent=1 // pred_check
      _
    $region27: #{tpu_custom_call.1} parent=1 // pred_check_branch
      %292 = sbr.rel (0) target = $region29
    $region28: #{tpu_custom_call.1} parent=1 // pred_region
      _
    $region29: #{tpu_custom_call.1} parent=1 // pred_fallthru
      _
    %293 = vsyncpa [#allocation3], 1
    %294 = vsyncpa [#allocation5], 1

</llo_original>
